<compile_context>
chip_gen: v7x
topology: tpu7x:2x2x1
jax: 0.10.0
libtpu: 0.0.40
codegen_flags: <defaults>
</compile_context>

<pallas_src>
import functools

import numpy as np
import jax
import jax.numpy as jnp
from jax import lax
from jax.experimental import pallas as pl
from jax.experimental.pallas import tpu as pltpu

LANE = 128


def _make_kernel(B, T, E, H, d, n_pad):
    """Single-invocation kernel. Static shapes: N = B*T padded to n_pad lanes."""
    inv_scale = 1.0 / (float(d) ** 0.5)
    inv_T = 1.0 / float(T)

    def kernel(x_ref, w_ref, b_ref, fcw_ref, fcb_ref, o_ref, emb_s):
        # x_ref: (1, Np)   w_ref/b_ref: (E, Np)   fcw_ref: (E, 1)   fcb_ref: (1,) SMEM
        # o_ref: (1, Np)   emb_s: VMEM scratch (E, Np)
        x = x_ref[...]                                                  # (1, Np)

        # --- EmbeddingFC + ReLU per head, and scores accumulation ---
        # scores[i, j, n] = sum_h (emb[h*d+i, n] / sqrt(d)) * emb[h*d+j, n]
        scores = None
        for h in range(H):                                              # static, H small
            eh = jnp.maximum(x * w_ref[h * d:(h + 1) * d, :]
                             + b_ref[h * d:(h + 1) * d, :], 0.0)        # (d, Np), 1 vreg
            emb_s[h * d:(h + 1) * d, :] = eh                            # stash for 2nd loop
            term = (eh * inv_scale)[:, None, :] * eh[None, :, :]        # (d, d, Np)
            scores = term if scores is None else scores + term

        # --- softmax over j (axis=1); scale already folded in above ---
        m = jnp.max(scores, axis=1, keepdims=True)                      # (d, 1, Np)
        p = jnp.exp(scores - m)                                         # (d, d, Np)
        denom = jnp.sum(p, axis=1, keepdims=True)                       # (d, 1, Np)
        attn = p * pl.reciprocal(denom, approx=True)                    # EUP vrcp

        # --- attn @ V per head, ReLU, Linear(E, 1) folded per head ---
        y = None
        for h in range(H):                                              # static, H small
            eh = emb_s[h * d:(h + 1) * d, :]                            # (d, Np) from scratch
            out_h = jnp.maximum(jnp.sum(attn * eh[None, :, :], axis=1), 0.0)  # (d, Np)
            contrib = jnp.sum(out_h * fcw_ref[h * d:(h + 1) * d, :],
                              axis=0, keepdims=True)                    # (1, Np)
            y = contrib if y is None else y + contrib
        y = y + fcb_ref[0]                                              # scalar bias (SMEM)

        # --- per-batch mean over its T positions, written lane-dense ---
        lane = lax.broadcasted_iota(jnp.int32, (1, n_pad), 1)
        res = None
        for bb in range(B):                                             # static, B small
            in_b = (lane >= bb * T) & (lane < (bb + 1) * T)
            s_b = jnp.sum(jnp.where(in_b, y, 0.0), keepdims=True)       # (1, 1)
            term = jnp.where(lane == bb, s_b * inv_T, 0.0)
            res = term if res is None else res + term
        o_ref[...] = res                                                # one lane-dense store

    return kernel


def prepare_params(w_tab, b_tab, fc_w, fc_b, *, B, T, num_heads, d_head):
    """One-time weight preprocessing (hoisted out of the per-call hot path)."""
    E = num_heads * d_head
    N = B * T
    n_pad = pl.cdiv(N, LANE) * LANE
    f32 = jnp.float32
    # Embedding rows for arange(T), transposed so positions land on lanes,
    # tiled over batch, lane-padded to a multiple of 128 with zeros.
    Wt = w_tab[:T].astype(f32)                                           # (T, E)
    Bt = b_tab[:T].astype(f32)
    WT = jnp.pad(jnp.tile(Wt.T, (1, B)), ((0, 0), (0, n_pad - N)))       # (E, Np)
    BT = jnp.pad(jnp.tile(Bt.T, (1, B)), ((0, 0), (0, n_pad - N)))       # (E, Np)
    fcw = fc_w.astype(f32).reshape(E, 1)                                 # (E, 1) column
    fcb = fc_b.astype(f32).reshape(1)                                    # (1,) SMEM scalar
    return WT, BT, fcw, fcb


@functools.partial(jax.jit, static_argnames=("num_heads", "d_head"))
def embedding_att_forward(x, WT, BT, fcw, fcb, *, num_heads, d_head):
    """Pallas forward. x: (B, T) float32 -> (B, 1) float32."""
    B, T = x.shape
    E = num_heads * d_head
    N = B * T
    n_pad = WT.shape[1]
    f32 = jnp.float32

    xf = jnp.pad(x.astype(f32).reshape(1, N), ((0, 0), (0, n_pad - N)))  # (1, Np)

    kernel = _make_kernel(B, T, E, num_heads, d_head, n_pad)
    out = pl.pallas_call(
        kernel,
        out_shape=jax.ShapeDtypeStruct((1, n_pad), f32),
        grid_spec=pltpu.PrefetchScalarGridSpec(
            num_scalar_prefetch=0,
            grid=(1,),                                            # single fused step
            in_specs=[
                pl.BlockSpec((1, n_pad), lambda i: (0, 0)),       # x (lane-dense)
                pl.BlockSpec((E, n_pad), lambda i: (0, 0)),       # weight rows^T
                pl.BlockSpec((E, n_pad), lambda i: (0, 0)),       # bias rows^T
                pl.BlockSpec((E, 1), lambda i: (0, 0)),           # fc weight column
                pl.BlockSpec(memory_space=pltpu.MemorySpace.SMEM),  # fc bias scalar
            ],
            out_specs=pl.BlockSpec((1, n_pad), lambda i: (0, 0)),
            scratch_shapes=[pltpu.VMEM((E, n_pad), f32)],         # emb scratch
        ),
        compiler_params=pltpu.CompilerParams(
            dimension_semantics=("arbitrary",)),
    )(xf, WT, BT, fcw, fcb)
    return out[0, :B].reshape(B, 1)


def reference_forward(x, w_tab, b_tab, fc_w, fc_b, *, num_heads, d_head):
    """Pure-JAX transcription of the torch module (for verification)."""
    B, T = x.shape
    E = num_heads * d_head
    W = w_tab[:T]
    bv = b_tab[:T]
    emb = x[:, :, None] * W[None] + bv[None]                       # (B, T, E)
    emb = jnp.maximum(emb, 0.0)
    qv = emb.reshape(B, T, num_heads, d_head)
    qr = jnp.swapaxes(qv, -2, -1)                                  # (B, T, d, H)
    scores = jnp.einsum('btih,btjh->btij', qr, qr) / (d_head ** 0.5)
    attn = jax.nn.softmax(scores, axis=-1)
    out_r = jnp.einsum('btij,btjh->btih', attn, qr)                # (B, T, d, H)
    out = jnp.swapaxes(out_r, -2, -1).reshape(B, T, E)
    out = jnp.maximum(out, 0.0)
    y = out @ fc_w.reshape(E) + fc_b.reshape(())                   # (B, T)
    return jnp.mean(y, axis=-1, keepdims=True)                     # (B, 1)


if __name__ == "__main__":
    # Model hyper-params (module constructor): hidden_dim = num_heads,
    # embedding_dim = d_head, total_emb_dim = hidden_dim * embedding_dim.
    hidden_dim = 4          # num_heads
    embedding_dim = 8       # d_head (multiple of 8 -> aligned sublane slices)
    max_embedding = 100
    E = hidden_dim * embedding_dim   # 32
    B, T = 2, 8

    key = jax.random.PRNGKey(0)
    k_x, k_w, k_fcw, k_fcb = jax.random.split(key, 4)

    # Deterministic parameter init mirroring the torch shapes/inits.
    xav_bound = float(np.sqrt(6.0 / (max_embedding + E)))          # xavier_uniform_
    w_tab = jax.random.uniform(k_w, (max_embedding, E), jnp.float32,
                               -xav_bound, xav_bound)
    b_tab = jnp.zeros((max_embedding, E), jnp.float32)             # zeros_
    lin_bound = float(1.0 / np.sqrt(E))                            # nn.Linear default
    fc_w = jax.random.uniform(k_fcw, (1, E), jnp.float32, -lin_bound, lin_bound)
    fc_b = jax.random.uniform(k_fcb, (1,), jnp.float32, -lin_bound, lin_bound)

    # Input values distributed like the original script: uniform in [-50, 100).
    x = jax.random.uniform(k_x, (B, T), jnp.float32) * 150.0 - 50.0

    # One-time weight preprocessing (out of the per-call hot path).
    WT, BT, fcw_col, fcb_s = prepare_params(
        w_tab, b_tab, fc_w, fc_b, B=B, T=T,
        num_heads=hidden_dim, d_head=embedding_dim)
    WT, BT, fcw_col, fcb_s = jax.block_until_ready((WT, BT, fcw_col, fcb_s))

    out = embedding_att_forward(x, WT, BT, fcw_col, fcb_s,
                                num_heads=hidden_dim, d_head=embedding_dim)
    out = jax.block_until_ready(out)

    ref = reference_forward(x, w_tab, b_tab, fc_w, fc_b,
                            num_heads=hidden_dim, d_head=embedding_dim)
    ref = jax.block_until_ready(ref)

    # Tolerance accounts for pl.reciprocal(approx=True) (~2^-12 rel) in softmax.
    np.testing.assert_allclose(np.asarray(out), np.asarray(ref),
                               rtol=2e-3, atol=2e-3)
    assert out.shape == (B, 1)
    print("KERNEL_OK")
</pallas_src>

<mosaic_0001>
module attributes {stable_mosaic.version = 11 : i64} {
  func.func @kernel(%arg0: i32, %arg1: memref<1x128xf32, #tpu.memory_space<vmem>>, %arg2: memref<32x128xf32, #tpu.memory_space<vmem>>, %arg3: memref<32x128xf32, #tpu.memory_space<vmem>>, %arg4: memref<32x1xf32, #tpu.memory_space<vmem>>, %arg5: memref<1xf32, #tpu.memory_space<smem>>, %arg6: memref<1x128xf32, #tpu.memory_space<vmem>>, %arg7: memref<32x128xf32, #tpu.memory_space<vmem>>) attributes {dimension_semantics = [#tpu.dimension_semantics<arbitrary>], iteration_bounds = array<i64: 1>, scalar_prefetch = 0 : i64, scratch_operands = 1 : i64, tpu.core_type = #tpu.core_type<tc>, window_params = [{pipeline_mode = #tpu.pipeline_mode<synchronous>, transform_indices = @transform_0, window_bounds = array<i64: 1, 128>}, {pipeline_mode = #tpu.pipeline_mode<synchronous>, transform_indices = @transform_1, window_bounds = array<i64: 32, 128>}, {pipeline_mode = #tpu.pipeline_mode<synchronous>, transform_indices = @transform_2, window_bounds = array<i64: 32, 128>}, {pipeline_mode = #tpu.pipeline_mode<synchronous>, transform_indices = @transform_3, window_bounds = array<i64: 32, 1>}, {transform_indices = @transform_4, window_bounds = array<i64: 1>}, {pipeline_mode = #tpu.pipeline_mode<synchronous>, transform_indices = @transform_5, window_bounds = array<i64: 1, 128>}]} {
    %c0 = arith.constant 0 : index
    %c0_0 = arith.constant 0 : index
    %0 = vector.load %arg1[%c0, %c0_0] : memref<1x128xf32, #tpu.memory_space<vmem>>, vector<1x128xf32>
    %c0_1 = arith.constant 0 : index
    %c0_2 = arith.constant 0 : index
    %1 = vector.load %arg2[%c0_1, %c0_2] : memref<32x128xf32, #tpu.memory_space<vmem>>, vector<8x128xf32>
    %2 = vector.broadcast %0 : vector<1x128xf32> to vector<8x128xf32>
    %3 = arith.mulf %2, %1 : vector<8x128xf32>
    %c0_3 = arith.constant 0 : index
    %c0_4 = arith.constant 0 : index
    %4 = vector.load %arg3[%c0_3, %c0_4] : memref<32x128xf32, #tpu.memory_space<vmem>>, vector<8x128xf32>
    %5 = arith.addf %3, %4 : vector<8x128xf32>
    %cst = arith.constant 0.000000e+00 : f32
    %6 = vector.broadcast %cst : f32 to vector<8x128xf32>
    %7 = arith.maximumf %5, %6 : vector<8x128xf32>
    %c0_5 = arith.constant 0 : index
    %c0_6 = arith.constant 0 : index
    %8 = vector.load %arg7[%c0_5, %c0_6] : memref<32x128xf32, #tpu.memory_space<vmem>>, vector<8x128xf32>
    tpu.vector_store %arg7[%c0_5, %c0_6], %7 {strides = array<i32>} : memref<32x128xf32, #tpu.memory_space<vmem>>, vector<8x128xf32>,
    %cst_7 = arith.constant 0.353553385 : f32
    %9 = vector.broadcast %cst_7 : f32 to vector<8x128xf32>
    %10 = arith.mulf %7, %9 : vector<8x128xf32>
    %11 = vector.shape_cast %10 : vector<8x128xf32> to vector<8x1x128xf32>
    %12 = vector.shape_cast %7 : vector<8x128xf32> to vector<1x8x128xf32>
    %13 = vector.broadcast %11 : vector<8x1x128xf32> to vector<8x8x128xf32>
    %14 = vector.broadcast %12 : vector<1x8x128xf32> to vector<8x8x128xf32>
    %15 = arith.mulf %13, %14 : vector<8x8x128xf32>
    %c8 = arith.constant 8 : index
    %c0_8 = arith.constant 0 : index
    %16 = vector.load %arg2[%c8, %c0_8] : memref<32x128xf32, #tpu.memory_space<vmem>>, vector<8x128xf32>
    %17 = vector.broadcast %0 : vector<1x128xf32> to vector<8x128xf32>
    %18 = arith.mulf %17, %16 : vector<8x128xf32>
    %c8_9 = arith.constant 8 : index
    %c0_10 = arith.constant 0 : index
    %19 = vector.load %arg3[%c8_9, %c0_10] : memref<32x128xf32, #tpu.memory_space<vmem>>, vector<8x128xf32>
    %20 = arith.addf %18, %19 : vector<8x128xf32>
    %cst_11 = arith.constant 0.000000e+00 : f32
    %21 = vector.broadcast %cst_11 : f32 to vector<8x128xf32>
    %22 = arith.maximumf %20, %21 : vector<8x128xf32>
    %c8_12 = arith.constant 8 : index
    %c0_13 = arith.constant 0 : index
    %23 = vector.load %arg7[%c8_12, %c0_13] : memref<32x128xf32, #tpu.memory_space<vmem>>, vector<8x128xf32>
    tpu.vector_store %arg7[%c8_12, %c0_13], %22 {strides = array<i32>} : memref<32x128xf32, #tpu.memory_space<vmem>>, vector<8x128xf32>,
    %cst_14 = arith.constant 0.353553385 : f32
    %24 = vector.broadcast %cst_14 : f32 to vector<8x128xf32>
    %25 = arith.mulf %22, %24 : vector<8x128xf32>
    %26 = vector.shape_cast %25 : vector<8x128xf32> to vector<8x1x128xf32>
    %27 = vector.shape_cast %22 : vector<8x128xf32> to vector<1x8x128xf32>
    %28 = vector.broadcast %26 : vector<8x1x128xf32> to vector<8x8x128xf32>
    %29 = vector.broadcast %27 : vector<1x8x128xf32> to vector<8x8x128xf32>
    %30 = arith.mulf %28, %29 : vector<8x8x128xf32>
    %31 = arith.addf %15, %30 : vector<8x8x128xf32>
    %c16 = arith.constant 16 : index
    %c0_15 = arith.constant 0 : index
    %32 = vector.load %arg2[%c16, %c0_15] : memref<32x128xf32, #tpu.memory_space<vmem>>, vector<8x128xf32>
    %33 = vector.broadcast %0 : vector<1x128xf32> to vector<8x128xf32>
    %34 = arith.mulf %33, %32 : vector<8x128xf32>
    %c16_16 = arith.constant 16 : index
    %c0_17 = arith.constant 0 : index
    %35 = vector.load %arg3[%c16_16, %c0_17] : memref<32x128xf32, #tpu.memory_space<vmem>>, vector<8x128xf32>
    %36 = arith.addf %34, %35 : vector<8x128xf32>
    %cst_18 = arith.constant 0.000000e+00 : f32
    %37 = vector.broadcast %cst_18 : f32 to vector<8x128xf32>
    %38 = arith.maximumf %36, %37 : vector<8x128xf32>
    %c16_19 = arith.constant 16 : index
    %c0_20 = arith.constant 0 : index
    %39 = vector.load %arg7[%c16_19, %c0_20] : memref<32x128xf32, #tpu.memory_space<vmem>>, vector<8x128xf32>
    tpu.vector_store %arg7[%c16_19, %c0_20], %38 {strides = array<i32>} : memref<32x128xf32, #tpu.memory_space<vmem>>, vector<8x128xf32>,
    %cst_21 = arith.constant 0.353553385 : f32
    %40 = vector.broadcast %cst_21 : f32 to vector<8x128xf32>
    %41 = arith.mulf %38, %40 : vector<8x128xf32>
    %42 = vector.shape_cast %41 : vector<8x128xf32> to vector<8x1x128xf32>
    %43 = vector.shape_cast %38 : vector<8x128xf32> to vector<1x8x128xf32>
    %44 = vector.broadcast %42 : vector<8x1x128xf32> to vector<8x8x128xf32>
    %45 = vector.broadcast %43 : vector<1x8x128xf32> to vector<8x8x128xf32>
    %46 = arith.mulf %44, %45 : vector<8x8x128xf32>
    %47 = arith.addf %31, %46 : vector<8x8x128xf32>
    %c24 = arith.constant 24 : index
    %c0_22 = arith.constant 0 : index
    %48 = vector.load %arg2[%c24, %c0_22] : memref<32x128xf32, #tpu.memory_space<vmem>>, vector<8x128xf32>
    %49 = vector.broadcast %0 : vector<1x128xf32> to vector<8x128xf32>
    %50 = arith.mulf %49, %48 : vector<8x128xf32>
    %c24_23 = arith.constant 24 : index
    %c0_24 = arith.constant 0 : index
    %51 = vector.load %arg3[%c24_23, %c0_24] : memref<32x128xf32, #tpu.memory_space<vmem>>, vector<8x128xf32>
    %52 = arith.addf %50, %51 : vector<8x128xf32>
    %cst_25 = arith.constant 0.000000e+00 : f32
    %53 = vector.broadcast %cst_25 : f32 to vector<8x128xf32>
    %54 = arith.maximumf %52, %53 : vector<8x128xf32>
    %c24_26 = arith.constant 24 : index
    %c0_27 = arith.constant 0 : index
    %55 = vector.load %arg7[%c24_26, %c0_27] : memref<32x128xf32, #tpu.memory_space<vmem>>, vector<8x128xf32>
    tpu.vector_store %arg7[%c24_26, %c0_27], %54 {strides = array<i32>} : memref<32x128xf32, #tpu.memory_space<vmem>>, vector<8x128xf32>,
    %cst_28 = arith.constant 0.353553385 : f32
    %56 = vector.broadcast %cst_28 : f32 to vector<8x128xf32>
    %57 = arith.mulf %54, %56 : vector<8x128xf32>
    %58 = vector.shape_cast %57 : vector<8x128xf32> to vector<8x1x128xf32>
    %59 = vector.shape_cast %54 : vector<8x128xf32> to vector<1x8x128xf32>
    %60 = vector.broadcast %58 : vector<8x1x128xf32> to vector<8x8x128xf32>
    %61 = vector.broadcast %59 : vector<1x8x128xf32> to vector<8x8x128xf32>
    %62 = arith.mulf %60, %61 : vector<8x8x128xf32>
    %63 = arith.addf %47, %62 : vector<8x8x128xf32>
    %cst_29 = arith.constant dense<0xFF800000> : vector<8x128xf32>
    %64 = vector.multi_reduction <maximumf>, %63, %cst_29 [1] : vector<8x8x128xf32> to vector<8x128xf32>
    %65 = vector.shape_cast %64 : vector<8x128xf32> to vector<8x1x128xf32>
    %66 = vector.broadcast %65 : vector<8x1x128xf32> to vector<8x8x128xf32>
    %67 = arith.subf %63, %66 : vector<8x8x128xf32>
    %68 = math.exp %67 : vector<8x8x128xf32>
    %cst_30 = arith.constant dense<0.000000e+00> : vector<8x128xf32>
    %69 = vector.multi_reduction <add>, %68, %cst_30 [1] : vector<8x8x128xf32> to vector<8x128xf32>
    %70 = vector.shape_cast %69 : vector<8x128xf32> to vector<8x1x128xf32>
    %71 = tpu.reciprocal %70 {approx = true} : vector<8x1x128xf32> -> vector<8x1x128xf32>
    %72 = vector.broadcast %71 : vector<8x1x128xf32> to vector<8x8x128xf32>
    %73 = arith.mulf %68, %72 : vector<8x8x128xf32>
    %c0_31 = arith.constant 0 : index
    %c0_32 = arith.constant 0 : index
    %74 = vector.load %arg7[%c0_31, %c0_32] : memref<32x128xf32, #tpu.memory_space<vmem>>, vector<8x128xf32>
    %75 = vector.shape_cast %74 : vector<8x128xf32> to vector<1x8x128xf32>
    %76 = vector.broadcast %75 : vector<1x8x128xf32> to vector<8x8x128xf32>
    %77 = arith.mulf %73, %76 : vector<8x8x128xf32>
    %cst_33 = arith.constant dense<0.000000e+00> : vector<8x128xf32>
    %78 = vector.multi_reduction <add>, %77, %cst_33 [1] : vector<8x8x128xf32> to vector<8x128xf32>
    %cst_34 = arith.constant 0.000000e+00 : f32
    %79 = vector.broadcast %cst_34 : f32 to vector<8x128xf32>
    %80 = arith.maximumf %78, %79 : vector<8x128xf32>
    %c0_35 = arith.constant 0 : index
    %c0_36 = arith.constant 0 : index
    %81 = vector.load %arg4[%c0_35, %c0_36] : memref<32x1xf32, #tpu.memory_space<vmem>>, vector<8x1xf32>
    %82 = vector.broadcast %81 : vector<8x1xf32> to vector<8x128xf32>
    %83 = arith.mulf %80, %82 : vector<8x128xf32>
    %cst_37 = arith.constant dense<0.000000e+00> : vector<128xf32>
    %84 = vector.multi_reduction <add>, %83, %cst_37 [0] : vector<8x128xf32> to vector<128xf32>
    %85 = vector.shape_cast %84 : vector<128xf32> to vector<1x128xf32>
    %c8_38 = arith.constant 8 : index
    %c0_39 = arith.constant 0 : index
    %86 = vector.load %arg7[%c8_38, %c0_39] : memref<32x128xf32, #tpu.memory_space<vmem>>, vector<8x128xf32>
    %87 = vector.shape_cast %86 : vector<8x128xf32> to vector<1x8x128xf32>
    %88 = vector.broadcast %87 : vector<1x8x128xf32> to vector<8x8x128xf32>
    %89 = arith.mulf %73, %88 : vector<8x8x128xf32>
    %cst_40 = arith.constant dense<0.000000e+00> : vector<8x128xf32>
    %90 = vector.multi_reduction <add>, %89, %cst_40 [1] : vector<8x8x128xf32> to vector<8x128xf32>
    %cst_41 = arith.constant 0.000000e+00 : f32
    %91 = vector.broadcast %cst_41 : f32 to vector<8x128xf32>
    %92 = arith.maximumf %90, %91 : vector<8x128xf32>
    %c8_42 = arith.constant 8 : index
    %c0_43 = arith.constant 0 : index
    %93 = vector.load %arg4[%c8_42, %c0_43] : memref<32x1xf32, #tpu.memory_space<vmem>>, vector<8x1xf32>
    %94 = vector.broadcast %93 : vector<8x1xf32> to vector<8x128xf32>
    %95 = arith.mulf %92, %94 : vector<8x128xf32>
    %cst_44 = arith.constant dense<0.000000e+00> : vector<128xf32>
    %96 = vector.multi_reduction <add>, %95, %cst_44 [0] : vector<8x128xf32> to vector<128xf32>
    %97 = vector.shape_cast %96 : vector<128xf32> to vector<1x128xf32>
    %98 = arith.addf %85, %97 : vector<1x128xf32>
    %c16_45 = arith.constant 16 : index
    %c0_46 = arith.constant 0 : index
    %99 = vector.load %arg7[%c16_45, %c0_46] : memref<32x128xf32, #tpu.memory_space<vmem>>, vector<8x128xf32>
    %100 = vector.shape_cast %99 : vector<8x128xf32> to vector<1x8x128xf32>
    %101 = vector.broadcast %100 : vector<1x8x128xf32> to vector<8x8x128xf32>
    %102 = arith.mulf %73, %101 : vector<8x8x128xf32>
    %cst_47 = arith.constant dense<0.000000e+00> : vector<8x128xf32>
    %103 = vector.multi_reduction <add>, %102, %cst_47 [1] : vector<8x8x128xf32> to vector<8x128xf32>
    %cst_48 = arith.constant 0.000000e+00 : f32
    %104 = vector.broadcast %cst_48 : f32 to vector<8x128xf32>
    %105 = arith.maximumf %103, %104 : vector<8x128xf32>
    %c16_49 = arith.constant 16 : index
    %c0_50 = arith.constant 0 : index
    %106 = vector.load %arg4[%c16_49, %c0_50] : memref<32x1xf32, #tpu.memory_space<vmem>>, vector<8x1xf32>
    %107 = vector.broadcast %106 : vector<8x1xf32> to vector<8x128xf32>
    %108 = arith.mulf %105, %107 : vector<8x128xf32>
    %cst_51 = arith.constant dense<0.000000e+00> : vector<128xf32>
    %109 = vector.multi_reduction <add>, %108, %cst_51 [0] : vector<8x128xf32> to vector<128xf32>
    %110 = vector.shape_cast %109 : vector<128xf32> to vector<1x128xf32>
    %111 = arith.addf %98, %110 : vector<1x128xf32>
    %c24_52 = arith.constant 24 : index
    %c0_53 = arith.constant 0 : index
    %112 = vector.load %arg7[%c24_52, %c0_53] : memref<32x128xf32, #tpu.memory_space<vmem>>, vector<8x128xf32>
    %113 = vector.shape_cast %112 : vector<8x128xf32> to vector<1x8x128xf32>
    %114 = vector.broadcast %113 : vector<1x8x128xf32> to vector<8x8x128xf32>
    %115 = arith.mulf %73, %114 : vector<8x8x128xf32>
    %cst_54 = arith.constant dense<0.000000e+00> : vector<8x128xf32>
    %116 = vector.multi_reduction <add>, %115, %cst_54 [1] : vector<8x8x128xf32> to vector<8x128xf32>
    %cst_55 = arith.constant 0.000000e+00 : f32
    %117 = vector.broadcast %cst_55 : f32 to vector<8x128xf32>
    %118 = arith.maximumf %116, %117 : vector<8x128xf32>
    %c24_56 = arith.constant 24 : index
    %c0_57 = arith.constant 0 : index
    %119 = vector.load %arg4[%c24_56, %c0_57] : memref<32x1xf32, #tpu.memory_space<vmem>>, vector<8x1xf32>
    %120 = vector.broadcast %119 : vector<8x1xf32> to vector<8x128xf32>
    %121 = arith.mulf %118, %120 : vector<8x128xf32>
    %cst_58 = arith.constant dense<0.000000e+00> : vector<128xf32>
    %122 = vector.multi_reduction <add>, %121, %cst_58 [0] : vector<8x128xf32> to vector<128xf32>
    %123 = vector.shape_cast %122 : vector<128xf32> to vector<1x128xf32>
    %124 = arith.addf %111, %123 : vector<1x128xf32>
    %c0_59 = arith.constant 0 : index
    %125 = memref.load %arg5[%c0_59] : memref<1xf32, #tpu.memory_space<smem>>
    %126 = vector.broadcast %125 : f32 to vector<1x128xf32>
    %127 = arith.addf %124, %126 : vector<1x128xf32>
    %128 = tpu.iota {dimensions = array<i32: 1>} : vector<1x128xi32>
    %c0_i32 = arith.constant 0 : i32
    %129 = vector.broadcast %c0_i32 : i32 to vector<1x128xi32>
    %130 = arith.cmpi sge, %128, %129 : vector<1x128xi32>
    %c8_i32 = arith.constant 8 : i32
    %131 = vector.broadcast %c8_i32 : i32 to vector<1x128xi32>
    %132 = arith.cmpi slt, %128, %131 : vector<1x128xi32>
    %133 = arith.andi %130, %132 : vector<1x128xi1>
    %cst_60 = arith.constant 0.000000e+00 : f32
    %134 = vector.broadcast %cst_60 : f32 to vector<1x128xf32>
    %135 = arith.select %133, %127, %134 : vector<1x128xi1>, vector<1x128xf32>
    %136 = vector.shape_cast %135 : vector<1x128xf32> to vector<1x1x128xf32>
    %cst_61 = arith.constant dense<0.000000e+00> : vector<1xf32>
    %137 = vector.multi_reduction <add>, %136, %cst_61 [1, 2] : vector<1x1x128xf32> to vector<1xf32>
    %138 = vector.shape_cast %137 : vector<1xf32> to vector<1x1x1xf32>
    %139 = vector.extract %138[0, 0, 0] : f32 from vector<1x1x1xf32>
    %140 = vector.broadcast %139 : f32 to vector<1x1xf32>
    %c0_i32_62 = arith.constant 0 : i32
    %141 = vector.broadcast %c0_i32_62 : i32 to vector<1x128xi32>
    %142 = arith.cmpi eq, %128, %141 : vector<1x128xi32>
    %cst_63 = arith.constant 1.250000e-01 : f32
    %143 = vector.broadcast %cst_63 : f32 to vector<1x1xf32>
    %144 = arith.mulf %140, %143 : vector<1x1xf32>
    %cst_64 = arith.constant 0.000000e+00 : f32
    %145 = vector.shape_cast %144 : vector<1x1xf32> to vector<1x1xf32>
    %146 = vector.broadcast %145 : vector<1x1xf32> to vector<1x128xf32>
    %147 = vector.broadcast %cst_64 : f32 to vector<1x128xf32>
    %148 = arith.select %142, %146, %147 : vector<1x128xi1>, vector<1x128xf32>
    %c8_i32_65 = arith.constant 8 : i32
    %149 = vector.broadcast %c8_i32_65 : i32 to vector<1x128xi32>
    %150 = arith.cmpi sge, %128, %149 : vector<1x128xi32>
    %c16_i32 = arith.constant 16 : i32
    %151 = vector.broadcast %c16_i32 : i32 to vector<1x128xi32>
    %152 = arith.cmpi slt, %128, %151 : vector<1x128xi32>
    %153 = arith.andi %150, %152 : vector<1x128xi1>
    %cst_66 = arith.constant 0.000000e+00 : f32
    %154 = vector.broadcast %cst_66 : f32 to vector<1x128xf32>
    %155 = arith.select %153, %127, %154 : vector<1x128xi1>, vector<1x128xf32>
    %156 = vector.shape_cast %155 : vector<1x128xf32> to vector<1x1x128xf32>
    %cst_67 = arith.constant dense<0.000000e+00> : vector<1xf32>
    %157 = vector.multi_reduction <add>, %156, %cst_67 [1, 2] : vector<1x1x128xf32> to vector<1xf32>
    %158 = vector.shape_cast %157 : vector<1xf32> to vector<1x1x1xf32>
    %159 = vector.extract %158[0, 0, 0] : f32 from vector<1x1x1xf32>
    %160 = vector.broadcast %159 : f32 to vector<1x1xf32>
    %c1_i32 = arith.constant 1 : i32
    %161 = vector.broadcast %c1_i32 : i32 to vector<1x128xi32>
    %162 = arith.cmpi eq, %128, %161 : vector<1x128xi32>
    %cst_68 = arith.constant 1.250000e-01 : f32
    %163 = vector.broadcast %cst_68 : f32 to vector<1x1xf32>
    %164 = arith.mulf %160, %163 : vector<1x1xf32>
    %cst_69 = arith.constant 0.000000e+00 : f32
    %165 = vector.shape_cast %164 : vector<1x1xf32> to vector<1x1xf32>
    %166 = vector.broadcast %165 : vector<1x1xf32> to vector<1x128xf32>
    %167 = vector.broadcast %cst_69 : f32 to vector<1x128xf32>
    %168 = arith.select %162, %166, %167 : vector<1x128xi1>, vector<1x128xf32>
    %169 = arith.addf %148, %168 : vector<1x128xf32>
    %c0_70 = arith.constant 0 : index
    %c0_71 = arith.constant 0 : index
    %170 = vector.load %arg6[%c0_70, %c0_71] : memref<1x128xf32, #tpu.memory_space<vmem>>, vector<1x128xf32>
    tpu.vector_store %arg6[%c0_70, %c0_71], %169 {strides = array<i32>} : memref<1x128xf32, #tpu.memory_space<vmem>>, vector<1x128xf32>,
    return
  }
  func.func @transform_0(%arg0: i32) -> (i32, i32) {
    %c0_i32 = arith.constant 0 : i32
    %c0_i32_0 = arith.constant 0 : i32
    %c0_i32_1 = arith.constant 0 : i32
    return %c0_i32, %c0_i32_0 : i32, i32
  }
  func.func @transform_1(%arg0: i32) -> (i32, i32) {
    %c0_i32 = arith.constant 0 : i32
    %c0_i32_0 = arith.constant 0 : i32
    %c0_i32_1 = arith.constant 0 : i32
    return %c0_i32, %c0_i32_0 : i32, i32
  }
  func.func @transform_2(%arg0: i32) -> (i32, i32) {
    %c0_i32 = arith.constant 0 : i32
    %c0_i32_0 = arith.constant 0 : i32
    %c0_i32_1 = arith.constant 0 : i32
    return %c0_i32, %c0_i32_0 : i32, i32
  }
  func.func @transform_3(%arg0: i32) -> (i32, i32) {
    %c0_i32 = arith.constant 0 : i32
    %c0_i32_0 = arith.constant 0 : i32
    %c0_i32_1 = arith.constant 0 : i32
    return %c0_i32, %c0_i32_0 : i32, i32
  }
  func.func @transform_4(%arg0: i32) -> i32 {
    %c0_i32 = arith.constant 0 : i32
    %c0_i32_0 = arith.constant 0 : i32
    return %c0_i32 : i32
  }
  func.func @transform_5(%arg0: i32) -> (i32, i32) {
    %c0_i32 = arith.constant 0 : i32
    %c0_i32_0 = arith.constant 0 : i32
    %c0_i32_1 = arith.constant 0 : i32
    return %c0_i32, %c0_i32_0 : i32, i32
  }
}

</mosaic_0001>

<llo_original>
// kernel: embedding_att_forward.1
$region0: #{embedding_att_forward.1}
  #allocation0 [shape = 'u32[]', space=smem, size = 0x4, offset = 0x4, fixed_abs, tag = 'smem constant byte address 0x4 - core index']
  #allocation1 [shape = 'u32[144,128]{1,0:T(1,128)}', space=vmem, size = 0x12000, scoped, tag = 'internal scratch']
  #allocation2 [shape = 'f32[32,128]{1,0:T(8,128)}', space=vmem, size = 0x4000, scoped, tag = 'scratch operand']
  #allocation3 [shape = 'f32[1]{0:T(128)S(6)}', space=smem, size = 0x200, scoped, tag = 'scoped memory for embedding_att_forward.1']
  %s0 = inlined_call_operand.vmem [shape: f32[1,128], index: 0, kind: input, shape index: {}]
  %s1 = inlined_call_operand.vmem [shape: f32[32,128], index: 1, kind: input, shape index: {}]
  %s2 = inlined_call_operand.hbm [shape: f32[32,128], index: 2, kind: input, shape index: {}]
  %s3 = inlined_call_operand.vmem [shape: f32[32,1], index: 3, kind: input, shape index: {}]
  %s4 = inlined_call_operand.<no memory space> [shape: f32[1], index: 4, kind: input, shape index: {}]
  %s5 = inlined_call_operand.vmem [shape: f32[1,128], index: 5, kind: output, shape index: {}]
  %s6 = sld [smem:[#allocation0]]
  $region34: #{embedding_att_forward.1} parent=0
    _
  %s8 = ssub.s32 1, %s6
  %s9 = scalar_select 0, %s8, %s6
  %10 = sst [smem:[#allocation3]] %s4
  $region1: #{embedding_att_forward.1} parent=0
    #allocation4 [shape = 'u8[16384]{0}', space=vmem, size = 0x4000, scoped, tag = 'input window, operand 2, single buffered']
    #allocation5 [shape = 's32[1]{0}', space=sflag, size = 0x4, scoped, tag = 'scoped memory for embedding_att_forward.1']
    %11 = vsyncpa [#allocation5], 0
    // Predicated region
    $region2: #{embedding_att_forward.1} parent=1 // pred_check
      _
    $region3: #{embedding_att_forward.1} parent=1 // pred_check_branch
      %13 = sbr.rel (0) target = $region5
    $region4: #{embedding_att_forward.1} parent=1 // pred_region
      _
    $region5: #{embedding_att_forward.1} parent=1 // pred_fallthru
      _
    // Predicated region
    $region6: #{embedding_att_forward.1} parent=1 // pred_check
      _
    $region7: #{embedding_att_forward.1} parent=1 // pred_check_branch
      %15 = sbr.rel (0) target = $region9
    $region8: #{embedding_att_forward.1} parent=1 // pred_region
      _
    $region9: #{embedding_att_forward.1} parent=1 // pred_fallthru
      _
    // Predicated region
    $region10: #{embedding_att_forward.1} parent=1 // pred_check
      _
    $region11: #{embedding_att_forward.1} parent=1 // pred_check_branch
      %17 = sbr.rel (0) target = $region13
    $region12: #{embedding_att_forward.1} parent=1 // pred_region
      %s19 = ssub.s32 512, 512
      %20 = vsyncadd [#allocation5], %s19
      %s21 = sshll.u32 [#allocation4], 4
      %s22 = int_to_ptr.vmem [resolvable:$true] %s21
      %27 = dma.hbm_to_vmem [thread:$0]  %s2, 512, %s22, [#allocation5], 128, 128, 8
    $region13: #{embedding_att_forward.1} parent=1 // pred_fallthru
      _
    // Predicated region
    $region14: #{embedding_att_forward.1} parent=1 // pred_check
      _
    $region15: #{embedding_att_forward.1} parent=1 // pred_check_branch
      %29 = sbr.rel (0) target = $region17
    $region16: #{embedding_att_forward.1} parent=1 // pred_region
      _
    $region17: #{embedding_att_forward.1} parent=1 // pred_fallthru
      _
    // Predicated region
    $region18: #{embedding_att_forward.1} parent=1 // pred_check
      _
    $region19: #{embedding_att_forward.1} parent=1 // pred_check_branch
      %31 = sbr.rel (0) target = $region21
    $region20: #{embedding_att_forward.1} parent=1 // pred_region
      _
    $region21: #{embedding_att_forward.1} parent=1 // pred_fallthru
      _
    // Predicated region
    $region22: #{embedding_att_forward.1} parent=1 // pred_check
      _
    $region23: #{embedding_att_forward.1} parent=1 // pred_check_branch
      %33 = sbr.rel (0) target = $region25
    $region24: #{embedding_att_forward.1} parent=1 // pred_region
      %34 = dma.done [#allocation5], 512
    $region25: #{embedding_att_forward.1} parent=1 // pred_fallthru
      _
    %v35 = vld [vmem:[%s0] sm:$0x1]
    %v36 = vld [vmem:[%s1] sm:$0xff]
    %v38 = vlaneseq
    %v39 = vshrl.u32 %v38, 7
    %v40 = vsub.s32 0, %v39
    %v41 = vrot.slane %v35, %v40
    %v43 = vmul.f32 %v41, %v36
    %v44 = vld [vmem:[#allocation4] sm:$0xff]
    %v45 = vadd.f32 %v43, %v44
    %v46 = vmax.f32 %v45, 0.0
    %47 = vst [vmem:[#allocation2] sm:$0xff] %v46
    %v48 = vmul.f32 %v46, 0.35355338
    %v50 = vcombine.high %v48, %v48
    %v52 = vunpack.c.l.s4 1966171168
    %v53 = vunpack.c.0.s8 %v52
    %v54 = vlaneseq
    %v55 = vshrl.u32 %v54, 7
    %v56 = vsub.s32 %v53, %v55
    %v57 = vrot.slane %v48, %v56
    %v59 = vunpack.c.l.s4 1966171168
    %v60 = vunpack.c.0.s8 %v59
    %v61 = vlaneseq
    %v62 = vshrl.u32 %v61, 7
    %v63 = vsub.s32 %v60, %v62
    %v64 = vrot.slane %v50, %v63
    %v65 = vcombine.high %v57, %v57
    %v66 = vcombine.high %v64, %v64
    %v68 = vunpack.c.l.s4 1966171168
    %v69 = vunpack.c.0.s8 %v68
    %v70 = vlaneseq
    %v71 = vshrl.u32 %v70, 7
    %v72 = vsub.s32 %v69, %v71
    %v73 = vrot.slane %v57, %v72
    %v75 = vunpack.c.l.s4 1966171168
    %v76 = vunpack.c.0.s8 %v75
    %v77 = vlaneseq
    %v78 = vshrl.u32 %v77, 7
    %v79 = vsub.s32 %v76, %v78
    %v80 = vrot.slane %v64, %v79
    %v82 = vunpack.c.l.s4 1966171168
    %v83 = vunpack.c.0.s8 %v82
    %v84 = vlaneseq
    %v85 = vshrl.u32 %v84, 7
    %v86 = vsub.s32 %v83, %v85
    %v87 = vrot.slane %v65, %v86
    %v89 = vunpack.c.l.s4 1966171168
    %v90 = vunpack.c.0.s8 %v89
    %v91 = vlaneseq
    %v92 = vshrl.u32 %v91, 7
    %v93 = vsub.s32 %v90, %v92
    %v94 = vrot.slane %v66, %v93
    %v95 = vcombine.high %v73, %v73
    %v96 = vcombine.high %v80, %v80
    %v97 = vcombine.high %v87, %v87
    %v98 = vcombine.high %v94, %v94
    %v99 = vlaneseq
    %v100 = vshrl.u32 %v99, 7
    %v101 = vsub.s32 0, %v100
    %v102 = vrot.slane %v73, %v101
    %v103 = vlaneseq
    %v104 = vshrl.u32 %v103, 7
    %v105 = vsub.s32 0, %v104
    %v106 = vrot.slane %v87, %v105
    %v107 = vlaneseq
    %v108 = vshrl.u32 %v107, 7
    %v109 = vsub.s32 0, %v108
    %v110 = vrot.slane %v95, %v109
    %v111 = vlaneseq
    %v112 = vshrl.u32 %v111, 7
    %v113 = vsub.s32 0, %v112
    %v114 = vrot.slane %v97, %v113
    %v115 = vlaneseq
    %v116 = vshrl.u32 %v115, 7
    %v117 = vsub.s32 0, %v116
    %v118 = vrot.slane %v80, %v117
    %v119 = vlaneseq
    %v120 = vshrl.u32 %v119, 7
    %v121 = vsub.s32 0, %v120
    %v122 = vrot.slane %v94, %v121
    %v123 = vlaneseq
    %v124 = vshrl.u32 %v123, 7
    %v125 = vsub.s32 0, %v124
    %v126 = vrot.slane %v96, %v125
    %v127 = vlaneseq
    %v128 = vshrl.u32 %v127, 7
    %v129 = vsub.s32 0, %v128
    %v130 = vrot.slane %v98, %v129
    %v139 = vmul.f32 %v102, %v46
    %v140 = vmul.f32 %v106, %v46
    %v141 = vmul.f32 %v110, %v46
    %v142 = vmul.f32 %v114, %v46
    %v143 = vmul.f32 %v118, %v46
    %v144 = vmul.f32 %v122, %v46
    %v145 = vmul.f32 %v126, %v46
    %v146 = vmul.f32 %v130, %v46
    %v147 = vld [vmem:[%s1 + $0x8] sm:$0xff]
    %v148 = vmul.f32 %v41, %v147
    %v149 = vld [vmem:[#allocation4 + $0x8] sm:$0xff]
    %v150 = vadd.f32 %v148, %v149
    %v151 = vmax.f32 %v150, 0.0
    %152 = vst [vmem:[#allocation2 + $0x8] sm:$0xff] %v151
    %v153 = vmul.f32 %v151, 0.35355338
    %v155 = vcombine.high %v153, %v153
    %v157 = vunpack.c.l.s4 1966171168
    %v158 = vunpack.c.0.s8 %v157
    %v159 = vlaneseq
    %v160 = vshrl.u32 %v159, 7
    %v161 = vsub.s32 %v158, %v160
    %v162 = vrot.slane %v153, %v161
    %v164 = vunpack.c.l.s4 1966171168
    %v165 = vunpack.c.0.s8 %v164
    %v166 = vlaneseq
    %v167 = vshrl.u32 %v166, 7
    %v168 = vsub.s32 %v165, %v167
    %v169 = vrot.slane %v155, %v168
    %v170 = vcombine.high %v162, %v162
    %v171 = vcombine.high %v169, %v169
    %v173 = vunpack.c.l.s4 1966171168
    %v174 = vunpack.c.0.s8 %v173
    %v175 = vlaneseq
    %v176 = vshrl.u32 %v175, 7
    %v177 = vsub.s32 %v174, %v176
    %v178 = vrot.slane %v162, %v177
    %v180 = vunpack.c.l.s4 1966171168
    %v181 = vunpack.c.0.s8 %v180
    %v182 = vlaneseq
    %v183 = vshrl.u32 %v182, 7
    %v184 = vsub.s32 %v181, %v183
    %v185 = vrot.slane %v169, %v184
    %v187 = vunpack.c.l.s4 1966171168
    %v188 = vunpack.c.0.s8 %v187
    %v189 = vlaneseq
    %v190 = vshrl.u32 %v189, 7
    %v191 = vsub.s32 %v188, %v190
    %v192 = vrot.slane %v170, %v191
    %v194 = vunpack.c.l.s4 1966171168
    %v195 = vunpack.c.0.s8 %v194
    %v196 = vlaneseq
    %v197 = vshrl.u32 %v196, 7
    %v198 = vsub.s32 %v195, %v197
    %v199 = vrot.slane %v171, %v198
    %v200 = vcombine.high %v178, %v178
    %v201 = vcombine.high %v185, %v185
    %v202 = vcombine.high %v192, %v192
    %v203 = vcombine.high %v199, %v199
    %v204 = vlaneseq
    %v205 = vshrl.u32 %v204, 7
    %v206 = vsub.s32 0, %v205
    %v207 = vrot.slane %v178, %v206
    %v208 = vlaneseq
    %v209 = vshrl.u32 %v208, 7
    %v210 = vsub.s32 0, %v209
    %v211 = vrot.slane %v192, %v210
    %v212 = vlaneseq
    %v213 = vshrl.u32 %v212, 7
    %v214 = vsub.s32 0, %v213
    %v215 = vrot.slane %v200, %v214
    %v216 = vlaneseq
    %v217 = vshrl.u32 %v216, 7
    %v218 = vsub.s32 0, %v217
    %v219 = vrot.slane %v202, %v218
    %v220 = vlaneseq
    %v221 = vshrl.u32 %v220, 7
    %v222 = vsub.s32 0, %v221
    %v223 = vrot.slane %v185, %v222
    %v224 = vlaneseq
    %v225 = vshrl.u32 %v224, 7
    %v226 = vsub.s32 0, %v225
    %v227 = vrot.slane %v199, %v226
    %v228 = vlaneseq
    %v229 = vshrl.u32 %v228, 7
    %v230 = vsub.s32 0, %v229
    %v231 = vrot.slane %v201, %v230
    %v232 = vlaneseq
    %v233 = vshrl.u32 %v232, 7
    %v234 = vsub.s32 0, %v233
    %v235 = vrot.slane %v203, %v234
    %v244 = vmul.f32 %v207, %v151
    %v245 = vmul.f32 %v211, %v151
    %v246 = vmul.f32 %v215, %v151
    %v247 = vmul.f32 %v219, %v151
    %v248 = vmul.f32 %v223, %v151
    %v249 = vmul.f32 %v227, %v151
    %v250 = vmul.f32 %v231, %v151
    %v251 = vmul.f32 %v235, %v151
    %v252 = vadd.f32 %v139, %v244
    %v253 = vadd.f32 %v140, %v245
    %v254 = vadd.f32 %v141, %v246
    %v255 = vadd.f32 %v142, %v247
    %v256 = vadd.f32 %v143, %v248
    %v257 = vadd.f32 %v144, %v249
    %v258 = vadd.f32 %v145, %v250
    %v259 = vadd.f32 %v146, %v251
    %v260 = vld [vmem:[%s1 + $0x10] sm:$0xff]
    %v261 = vmul.f32 %v41, %v260
    %v262 = vld [vmem:[#allocation4 + $0x10] sm:$0xff]
    %v263 = vadd.f32 %v261, %v262
    %v264 = vmax.f32 %v263, 0.0
    %265 = vst [vmem:[#allocation2 + $0x10] sm:$0xff] %v264
    %v266 = vmul.f32 %v264, 0.35355338
    %v268 = vcombine.high %v266, %v266
    %v270 = vunpack.c.l.s4 1966171168
    %v271 = vunpack.c.0.s8 %v270
    %v272 = vlaneseq
    %v273 = vshrl.u32 %v272, 7
    %v274 = vsub.s32 %v271, %v273
    %v275 = vrot.slane %v266, %v274
    %v277 = vunpack.c.l.s4 1966171168
    %v278 = vunpack.c.0.s8 %v277
    %v279 = vlaneseq
    %v280 = vshrl.u32 %v279, 7
    %v281 = vsub.s32 %v278, %v280
    %v282 = vrot.slane %v268, %v281
    %v283 = vcombine.high %v275, %v275
    %v284 = vcombine.high %v282, %v282
    %v286 = vunpack.c.l.s4 1966171168
    %v287 = vunpack.c.0.s8 %v286
    %v288 = vlaneseq
    %v289 = vshrl.u32 %v288, 7
    %v290 = vsub.s32 %v287, %v289
    %v291 = vrot.slane %v275, %v290
    %v293 = vunpack.c.l.s4 1966171168
    %v294 = vunpack.c.0.s8 %v293
    %v295 = vlaneseq
    %v296 = vshrl.u32 %v295, 7
    %v297 = vsub.s32 %v294, %v296
    %v298 = vrot.slane %v282, %v297
    %v300 = vunpack.c.l.s4 1966171168
    %v301 = vunpack.c.0.s8 %v300
    %v302 = vlaneseq
    %v303 = vshrl.u32 %v302, 7
    %v304 = vsub.s32 %v301, %v303
    %v305 = vrot.slane %v283, %v304
    %v307 = vunpack.c.l.s4 1966171168
    %v308 = vunpack.c.0.s8 %v307
    %v309 = vlaneseq
    %v310 = vshrl.u32 %v309, 7
    %v311 = vsub.s32 %v308, %v310
    %v312 = vrot.slane %v284, %v311
    %v313 = vcombine.high %v291, %v291
    %v314 = vcombine.high %v298, %v298
    %v315 = vcombine.high %v305, %v305
    %v316 = vcombine.high %v312, %v312
    %v317 = vlaneseq
    %v318 = vshrl.u32 %v317, 7
    %v319 = vsub.s32 0, %v318
    %v320 = vrot.slane %v291, %v319
    %v321 = vlaneseq
    %v322 = vshrl.u32 %v321, 7
    %v323 = vsub.s32 0, %v322
    %v324 = vrot.slane %v305, %v323
    %v325 = vlaneseq
    %v326 = vshrl.u32 %v325, 7
    %v327 = vsub.s32 0, %v326
    %v328 = vrot.slane %v313, %v327
    %v329 = vlaneseq
    %v330 = vshrl.u32 %v329, 7
    %v331 = vsub.s32 0, %v330
    %v332 = vrot.slane %v315, %v331
    %v333 = vlaneseq
    %v334 = vshrl.u32 %v333, 7
    %v335 = vsub.s32 0, %v334
    %v336 = vrot.slane %v298, %v335
    %v337 = vlaneseq
    %v338 = vshrl.u32 %v337, 7
    %v339 = vsub.s32 0, %v338
    %v340 = vrot.slane %v312, %v339
    %v341 = vlaneseq
    %v342 = vshrl.u32 %v341, 7
    %v343 = vsub.s32 0, %v342
    %v344 = vrot.slane %v314, %v343
    %v345 = vlaneseq
    %v346 = vshrl.u32 %v345, 7
    %v347 = vsub.s32 0, %v346
    %v348 = vrot.slane %v316, %v347
    %v357 = vmul.f32 %v320, %v264
    %v358 = vmul.f32 %v324, %v264
    %v359 = vmul.f32 %v328, %v264
    %v360 = vmul.f32 %v332, %v264
    %v361 = vmul.f32 %v336, %v264
    %v362 = vmul.f32 %v340, %v264
    %v363 = vmul.f32 %v344, %v264
    %v364 = vmul.f32 %v348, %v264
    %v365 = vadd.f32 %v252, %v357
    %v366 = vadd.f32 %v253, %v358
    %v367 = vadd.f32 %v254, %v359
    %v368 = vadd.f32 %v255, %v360
    %v369 = vadd.f32 %v256, %v361
    %v370 = vadd.f32 %v257, %v362
    %v371 = vadd.f32 %v258, %v363
    %v372 = vadd.f32 %v259, %v364
    %v373 = vld [vmem:[%s1 + $0x18] sm:$0xff]
    %v374 = vmul.f32 %v41, %v373
    %v375 = vld [vmem:[#allocation4 + $0x18] sm:$0xff]
    %v376 = vadd.f32 %v374, %v375
    %v377 = vmax.f32 %v376, 0.0
    %378 = vst [vmem:[#allocation2 + $0x18] sm:$0xff] %v377
    %v379 = vmul.f32 %v377, 0.35355338
    %v381 = vcombine.high %v379, %v379
    %v383 = vunpack.c.l.s4 1966171168
    %v384 = vunpack.c.0.s8 %v383
    %v385 = vlaneseq
    %v386 = vshrl.u32 %v385, 7
    %v387 = vsub.s32 %v384, %v386
    %v388 = vrot.slane %v379, %v387
    %v390 = vunpack.c.l.s4 1966171168
    %v391 = vunpack.c.0.s8 %v390
    %v392 = vlaneseq
    %v393 = vshrl.u32 %v392, 7
    %v394 = vsub.s32 %v391, %v393
    %v395 = vrot.slane %v381, %v394
    %v396 = vcombine.high %v388, %v388
    %v397 = vcombine.high %v395, %v395
    %v399 = vunpack.c.l.s4 1966171168
    %v400 = vunpack.c.0.s8 %v399
    %v401 = vlaneseq
    %v402 = vshrl.u32 %v401, 7
    %v403 = vsub.s32 %v400, %v402
    %v404 = vrot.slane %v388, %v403
    %v406 = vunpack.c.l.s4 1966171168
    %v407 = vunpack.c.0.s8 %v406
    %v408 = vlaneseq
    %v409 = vshrl.u32 %v408, 7
    %v410 = vsub.s32 %v407, %v409
    %v411 = vrot.slane %v395, %v410
    %v413 = vunpack.c.l.s4 1966171168
    %v414 = vunpack.c.0.s8 %v413
    %v415 = vlaneseq
    %v416 = vshrl.u32 %v415, 7
    %v417 = vsub.s32 %v414, %v416
    %v418 = vrot.slane %v396, %v417
    %v420 = vunpack.c.l.s4 1966171168
    %v421 = vunpack.c.0.s8 %v420
    %v422 = vlaneseq
    %v423 = vshrl.u32 %v422, 7
    %v424 = vsub.s32 %v421, %v423
    %v425 = vrot.slane %v397, %v424
    %v426 = vcombine.high %v404, %v404
    %v427 = vcombine.high %v411, %v411
    %v428 = vcombine.high %v418, %v418
    %v429 = vcombine.high %v425, %v425
    %v430 = vlaneseq
    %v431 = vshrl.u32 %v430, 7
    %v432 = vsub.s32 0, %v431
    %v433 = vrot.slane %v404, %v432
    %v434 = vlaneseq
    %v435 = vshrl.u32 %v434, 7
    %v436 = vsub.s32 0, %v435
    %v437 = vrot.slane %v418, %v436
    %v438 = vlaneseq
    %v439 = vshrl.u32 %v438, 7
    %v440 = vsub.s32 0, %v439
    %v441 = vrot.slane %v426, %v440
    %v442 = vlaneseq
    %v443 = vshrl.u32 %v442, 7
    %v444 = vsub.s32 0, %v443
    %v445 = vrot.slane %v428, %v444
    %v446 = vlaneseq
    %v447 = vshrl.u32 %v446, 7
    %v448 = vsub.s32 0, %v447
    %v449 = vrot.slane %v411, %v448
    %v450 = vlaneseq
    %v451 = vshrl.u32 %v450, 7
    %v452 = vsub.s32 0, %v451
    %v453 = vrot.slane %v425, %v452
    %v454 = vlaneseq
    %v455 = vshrl.u32 %v454, 7
    %v456 = vsub.s32 0, %v455
    %v457 = vrot.slane %v427, %v456
    %v458 = vlaneseq
    %v459 = vshrl.u32 %v458, 7
    %v460 = vsub.s32 0, %v459
    %v461 = vrot.slane %v429, %v460
    %v470 = vmul.f32 %v433, %v377
    %v471 = vmul.f32 %v437, %v377
    %v472 = vmul.f32 %v441, %v377
    %v473 = vmul.f32 %v445, %v377
    %v474 = vmul.f32 %v449, %v377
    %v475 = vmul.f32 %v453, %v377
    %v476 = vmul.f32 %v457, %v377
    %v477 = vmul.f32 %v461, %v377
    %v478 = vadd.f32 %v365, %v470
    %v479 = vadd.f32 %v366, %v471
    %v480 = vadd.f32 %v367, %v472
    %v481 = vadd.f32 %v368, %v473
    %v482 = vadd.f32 %v369, %v474
    %v483 = vadd.f32 %v370, %v475
    %v484 = vadd.f32 %v371, %v476
    %v485 = vadd.f32 %v372, %v477
    %v486 = vrot.slane %v478, 4
    %v487 = vmax.f32 %v478, %v486
    %v488 = vrot.slane %v487, 2
    %v489 = vmax.f32 %v487, %v488
    %v490 = vrot.slane %v489, 1
    %v491 = vmax.f32 %v489, %v490
    %v492 = vrot.slane %v479, 4
    %v493 = vmax.f32 %v479, %v492
    %v494 = vrot.slane %v493, 2
    %v495 = vmax.f32 %v493, %v494
    %v496 = vrot.slane %v495, 1
    %v497 = vmax.f32 %v495, %v496
    %v498 = vrot.slane %v480, 4
    %v499 = vmax.f32 %v480, %v498
    %v500 = vrot.slane %v499, 2
    %v501 = vmax.f32 %v499, %v500
    %v502 = vrot.slane %v501, 1
    %v503 = vmax.f32 %v501, %v502
    %v504 = vrot.slane %v481, 4
    %v505 = vmax.f32 %v481, %v504
    %v506 = vrot.slane %v505, 2
    %v507 = vmax.f32 %v505, %v506
    %v508 = vrot.slane %v507, 1
    %v509 = vmax.f32 %v507, %v508
    %v510 = vrot.slane %v482, 4
    %v511 = vmax.f32 %v482, %v510
    %v512 = vrot.slane %v511, 2
    %v513 = vmax.f32 %v511, %v512
    %v514 = vrot.slane %v513, 1
    %v515 = vmax.f32 %v513, %v514
    %v516 = vrot.slane %v483, 4
    %v517 = vmax.f32 %v483, %v516
    %v518 = vrot.slane %v517, 2
    %v519 = vmax.f32 %v517, %v518
    %v520 = vrot.slane %v519, 1
    %v521 = vmax.f32 %v519, %v520
    %v522 = vrot.slane %v484, 4
    %v523 = vmax.f32 %v484, %v522
    %v524 = vrot.slane %v523, 2
    %v525 = vmax.f32 %v523, %v524
    %v526 = vrot.slane %v525, 1
    %v527 = vmax.f32 %v525, %v526
    %v528 = vrot.slane %v485, 4
    %v529 = vmax.f32 %v485, %v528
    %v530 = vrot.slane %v529, 2
    %v531 = vmax.f32 %v529, %v530
    %v532 = vrot.slane %v531, 1
    %v533 = vmax.f32 %v531, %v532
    %v534 = vsub.f32 %v478, %v491
    %v535 = vsub.f32 %v479, %v497
    %v536 = vsub.f32 %v480, %v503
    %v537 = vsub.f32 %v481, %v509
    %v538 = vsub.f32 %v482, %v515
    %v539 = vsub.f32 %v483, %v521
    %v540 = vsub.f32 %v484, %v527
    %v541 = vsub.f32 %v485, %v533
    %v542 = vmul.f32 %v534, 1.442695
    %v543 = vpow.pop %v542
    %v544 = vmul.f32 %v535, 1.442695
    %v545 = vpow.pop %v544
    %v546 = vmul.f32 %v536, 1.442695
    %v547 = vpow.pop %v546
    %v548 = vmul.f32 %v537, 1.442695
    %v549 = vpow.pop %v548
    %v550 = vmul.f32 %v538, 1.442695
    %v551 = vpow.pop %v550
    %v552 = vmul.f32 %v539, 1.442695
    %v553 = vpow.pop %v552
    %v554 = vmul.f32 %v540, 1.442695
    %v555 = vpow.pop %v554
    %v556 = vmul.f32 %v541, 1.442695
    %v557 = vpow.pop %v556
    %v558 = vrot.slane %v543, 4
    %v559 = vadd.f32 %v543, %v558
    %v560 = vrot.slane %v559, 2
    %v561 = vadd.f32 %v559, %v560
    %v562 = vrot.slane %v561, 1
    %v563 = vadd.f32 %v561, %v562
    %v564 = vrot.slane %v545, 4
    %v565 = vadd.f32 %v545, %v564
    %v566 = vrot.slane %v565, 2
    %v567 = vadd.f32 %v565, %v566
    %v568 = vrot.slane %v567, 1
    %v569 = vadd.f32 %v567, %v568
    %v570 = vrot.slane %v547, 4
    %v571 = vadd.f32 %v547, %v570
    %v572 = vrot.slane %v571, 2
    %v573 = vadd.f32 %v571, %v572
    %v574 = vrot.slane %v573, 1
    %v575 = vadd.f32 %v573, %v574
    %v576 = vrot.slane %v549, 4
    %v577 = vadd.f32 %v549, %v576
    %v578 = vrot.slane %v577, 2
    %v579 = vadd.f32 %v577, %v578
    %v580 = vrot.slane %v579, 1
    %v581 = vadd.f32 %v579, %v580
    %v582 = vrot.slane %v551, 4
    %v583 = vadd.f32 %v551, %v582
    %v584 = vrot.slane %v583, 2
    %v585 = vadd.f32 %v583, %v584
    %v586 = vrot.slane %v585, 1
    %v587 = vadd.f32 %v585, %v586
    %v588 = vrot.slane %v553, 4
    %v589 = vadd.f32 %v553, %v588
    %v590 = vrot.slane %v589, 2
    %v591 = vadd.f32 %v589, %v590
    %v592 = vrot.slane %v591, 1
    %v593 = vadd.f32 %v591, %v592
    %v594 = vrot.slane %v555, 4
    %v595 = vadd.f32 %v555, %v594
    %v596 = vrot.slane %v595, 2
    %v597 = vadd.f32 %v595, %v596
    %v598 = vrot.slane %v597, 1
    %v599 = vadd.f32 %v597, %v598
    %v600 = vrot.slane %v557, 4
    %v601 = vadd.f32 %v557, %v600
    %v602 = vrot.slane %v601, 2
    %v603 = vadd.f32 %v601, %v602
    %v604 = vrot.slane %v603, 1
    %v605 = vadd.f32 %v603, %v604
    %v606 = vrcp.pop %v563
    %v607 = vrcp.pop %v569
    %v608 = vrcp.pop %v575
    %v609 = vrcp.pop %v581
    %v610 = vrcp.pop %v587
    %v611 = vrcp.pop %v593
    %v612 = vrcp.pop %v599
    %v613 = vrcp.pop %v605
    %v614 = vmul.f32 %v543, %v606
    %v615 = vmul.f32 %v545, %v607
    %v616 = vmul.f32 %v547, %v608
    %v617 = vmul.f32 %v549, %v609
    %v618 = vmul.f32 %v551, %v610
    %v619 = vmul.f32 %v553, %v611
    %v620 = vmul.f32 %v555, %v612
    %v621 = vmul.f32 %v557, %v613
    %v622 = vld [vmem:[#allocation2] sm:$0xff]
    %v623 = vmul.f32 %v614, %v622
    %v624 = vmul.f32 %v615, %v622
    %v625 = vmul.f32 %v616, %v622
    %v626 = vmul.f32 %v617, %v622
    %v627 = vmul.f32 %v618, %v622
    %v628 = vmul.f32 %v619, %v622
    %v629 = vmul.f32 %v620, %v622
    %v630 = vmul.f32 %v621, %v622
    %v631 = vrot.slane %v623, 4
    %v632 = vadd.f32 %v623, %v631
    %v633 = vrot.slane %v632, 2
    %v634 = vadd.f32 %v632, %v633
    %v635 = vrot.slane %v634, 1
    %v636 = vadd.f32 %v634, %v635
    %v637 = vrot.slane %v624, 4
    %v638 = vadd.f32 %v624, %v637
    %v639 = vrot.slane %v638, 2
    %v640 = vadd.f32 %v638, %v639
    %v641 = vrot.slane %v640, 1
    %v642 = vadd.f32 %v640, %v641
    %v643 = vrot.slane %v625, 4
    %v644 = vadd.f32 %v625, %v643
    %v645 = vrot.slane %v644, 2
    %v646 = vadd.f32 %v644, %v645
    %v647 = vrot.slane %v646, 1
    %v648 = vadd.f32 %v646, %v647
    %v649 = vrot.slane %v626, 4
    %v650 = vadd.f32 %v626, %v649
    %v651 = vrot.slane %v650, 2
    %v652 = vadd.f32 %v650, %v651
    %v653 = vrot.slane %v652, 1
    %v654 = vadd.f32 %v652, %v653
    %v655 = vrot.slane %v627, 4
    %v656 = vadd.f32 %v627, %v655
    %v657 = vrot.slane %v656, 2
    %v658 = vadd.f32 %v656, %v657
    %v659 = vrot.slane %v658, 1
    %v660 = vadd.f32 %v658, %v659
    %v661 = vrot.slane %v628, 4
    %v662 = vadd.f32 %v628, %v661
    %v663 = vrot.slane %v662, 2
    %v664 = vadd.f32 %v662, %v663
    %v665 = vrot.slane %v664, 1
    %v666 = vadd.f32 %v664, %v665
    %v667 = vrot.slane %v629, 4
    %v668 = vadd.f32 %v629, %v667
    %v669 = vrot.slane %v668, 2
    %v670 = vadd.f32 %v668, %v669
    %v671 = vrot.slane %v670, 1
    %v672 = vadd.f32 %v670, %v671
    %v673 = vrot.slane %v630, 4
    %v674 = vadd.f32 %v630, %v673
    %v675 = vrot.slane %v674, 2
    %v676 = vadd.f32 %v674, %v675
    %v677 = vrot.slane %v676, 1
    %v678 = vadd.f32 %v676, %v677
    %v679 = vmax.f32 %v636, 0.0
    %v680 = vmax.f32 %v642, 0.0
    %v681 = vmax.f32 %v648, 0.0
    %v682 = vmax.f32 %v654, 0.0
    %v683 = vmax.f32 %v660, 0.0
    %v684 = vmax.f32 %v666, 0.0
    %v685 = vmax.f32 %v672, 0.0
    %v686 = vmax.f32 %v678, 0.0
    %v687 = vld [vmem:[%s3] sm:$0xff]
    %689 = vset.pattern.permute.xlu0 0
    %690 = vperm.xlu0 %689, %v687
    %v691 = vpop.permute.xlu0 %690
    %v692 = vrot.slane %v691, 1
    %v693 = vrot.slane %v691, 2
    %v694 = vrot.slane %v691, 3
    %v695 = vrot.slane %v691, 4
    %v696 = vrot.slane %v691, 5
    %v697 = vrot.slane %v691, 6
    %v698 = vrot.slane %v691, 7
    %v707 = vmul.f32 %v679, %v691
    %v708 = vmul.f32 %v680, %v692
    %v709 = vmul.f32 %v681, %v693
    %v710 = vmul.f32 %v682, %v694
    %v711 = vmul.f32 %v683, %v695
    %v712 = vmul.f32 %v684, %v696
    %v713 = vmul.f32 %v685, %v697
    %v714 = vmul.f32 %v686, %v698
    %v723 = vrot.slane %v708, 7
    %vm724 = vcmask 1041409
    %v725 = vsel %vm724, %v723, %v707
    %v726 = vrot.slane %v709, 6
    %vm727 = vcmask 1042434
    %v728 = vsel %vm727, %v726, %v725
    %v729 = vrot.slane %v710, 5
    %vm730 = vcmask 1043459
    %v731 = vsel %vm730, %v729, %v728
    %v732 = vrot.slane %v711, 4
    %vm733 = vcmask 1044484
    %v734 = vsel %vm733, %v732, %v731
    %v735 = vrot.slane %v712, 3
    %vm736 = vcmask 1045509
    %v737 = vsel %vm736, %v735, %v734
    %v738 = vrot.slane %v713, 2
    %vm739 = vcmask 1046534
    %v740 = vsel %vm739, %v738, %v737
    %v741 = vrot.slane %v714, 1
    %vm742 = vcmask 1047559
    %v743 = vsel %vm742, %v741, %v740
    %v745 = vrot.slane %v743, 4
    %v746 = vadd.f32 %v743, %v745
    %v747 = vrot.slane %v746, 2
    %v748 = vadd.f32 %v746, %v747
    %v749 = vrot.slane %v748, 1
    %v750 = vadd.f32 %v748, %v749
    %v751 = vld [vmem:[#allocation2 + $0x8] sm:$0xff]
    %v752 = vmul.f32 %v614, %v751
    %v753 = vmul.f32 %v615, %v751
    %v754 = vmul.f32 %v616, %v751
    %v755 = vmul.f32 %v617, %v751
    %v756 = vmul.f32 %v618, %v751
    %v757 = vmul.f32 %v619, %v751
    %v758 = vmul.f32 %v620, %v751
    %v759 = vmul.f32 %v621, %v751
    %v760 = vrot.slane %v752, 4
    %v761 = vadd.f32 %v752, %v760
    %v762 = vrot.slane %v761, 2
    %v763 = vadd.f32 %v761, %v762
    %v764 = vrot.slane %v763, 1
    %v765 = vadd.f32 %v763, %v764
    %v766 = vrot.slane %v753, 4
    %v767 = vadd.f32 %v753, %v766
    %v768 = vrot.slane %v767, 2
    %v769 = vadd.f32 %v767, %v768
    %v770 = vrot.slane %v769, 1
    %v771 = vadd.f32 %v769, %v770
    %v772 = vrot.slane %v754, 4
    %v773 = vadd.f32 %v754, %v772
    %v774 = vrot.slane %v773, 2
    %v775 = vadd.f32 %v773, %v774
    %v776 = vrot.slane %v775, 1
    %v777 = vadd.f32 %v775, %v776
    %v778 = vrot.slane %v755, 4
    %v779 = vadd.f32 %v755, %v778
    %v780 = vrot.slane %v779, 2
    %v781 = vadd.f32 %v779, %v780
    %v782 = vrot.slane %v781, 1
    %v783 = vadd.f32 %v781, %v782
    %v784 = vrot.slane %v756, 4
    %v785 = vadd.f32 %v756, %v784
    %v786 = vrot.slane %v785, 2
    %v787 = vadd.f32 %v785, %v786
    %v788 = vrot.slane %v787, 1
    %v789 = vadd.f32 %v787, %v788
    %v790 = vrot.slane %v757, 4
    %v791 = vadd.f32 %v757, %v790
    %v792 = vrot.slane %v791, 2
    %v793 = vadd.f32 %v791, %v792
    %v794 = vrot.slane %v793, 1
    %v795 = vadd.f32 %v793, %v794
    %v796 = vrot.slane %v758, 4
    %v797 = vadd.f32 %v758, %v796
    %v798 = vrot.slane %v797, 2
    %v799 = vadd.f32 %v797, %v798
    %v800 = vrot.slane %v799, 1
    %v801 = vadd.f32 %v799, %v800
    %v802 = vrot.slane %v759, 4
    %v803 = vadd.f32 %v759, %v802
    %v804 = vrot.slane %v803, 2
    %v805 = vadd.f32 %v803, %v804
    %v806 = vrot.slane %v805, 1
    %v807 = vadd.f32 %v805, %v806
    %v808 = vmax.f32 %v765, 0.0
    %v809 = vmax.f32 %v771, 0.0
    %v810 = vmax.f32 %v777, 0.0
    %v811 = vmax.f32 %v783, 0.0
    %v812 = vmax.f32 %v789, 0.0
    %v813 = vmax.f32 %v795, 0.0
    %v814 = vmax.f32 %v801, 0.0
    %v815 = vmax.f32 %v807, 0.0
    %v816 = vld [vmem:[%s3 + $0x8] sm:$0xff]
    %818 = vset.pattern.permute.xlu0 0
    %819 = vperm.xlu0 %818, %v816
    %v820 = vpop.permute.xlu0 %819
    %v821 = vrot.slane %v820, 1
    %v822 = vrot.slane %v820, 2
    %v823 = vrot.slane %v820, 3
    %v824 = vrot.slane %v820, 4
    %v825 = vrot.slane %v820, 5
    %v826 = vrot.slane %v820, 6
    %v827 = vrot.slane %v820, 7
    %v836 = vmul.f32 %v808, %v820
    %v837 = vmul.f32 %v809, %v821
    %v838 = vmul.f32 %v810, %v822
    %v839 = vmul.f32 %v811, %v823
    %v840 = vmul.f32 %v812, %v824
    %v841 = vmul.f32 %v813, %v825
    %v842 = vmul.f32 %v814, %v826
    %v843 = vmul.f32 %v815, %v827
    %v852 = vrot.slane %v837, 7
    %v853 = vsel %vm724, %v852, %v836
    %v854 = vrot.slane %v838, 6
    %v855 = vsel %vm727, %v854, %v853
    %v856 = vrot.slane %v839, 5
    %v857 = vsel %vm730, %v856, %v855
    %v858 = vrot.slane %v840, 4
    %v859 = vsel %vm733, %v858, %v857
    %v860 = vrot.slane %v841, 3
    %v861 = vsel %vm736, %v860, %v859
    %v862 = vrot.slane %v842, 2
    %v863 = vsel %vm739, %v862, %v861
    %v864 = vrot.slane %v843, 1
    %v865 = vsel %vm742, %v864, %v863
    %v867 = vrot.slane %v865, 4
    %v868 = vadd.f32 %v865, %v867
    %v869 = vrot.slane %v868, 2
    %v870 = vadd.f32 %v868, %v869
    %v871 = vrot.slane %v870, 1
    %v872 = vadd.f32 %v870, %v871
    %v873 = vadd.f32 %v750, %v872
    %v874 = vld [vmem:[#allocation2 + $0x10] sm:$0xff]
    %v875 = vmul.f32 %v614, %v874
    %v876 = vmul.f32 %v615, %v874
    %v877 = vmul.f32 %v616, %v874
    %v878 = vmul.f32 %v617, %v874
    %v879 = vmul.f32 %v618, %v874
    %v880 = vmul.f32 %v619, %v874
    %v881 = vmul.f32 %v620, %v874
    %v882 = vmul.f32 %v621, %v874
    %v883 = vrot.slane %v875, 4
    %v884 = vadd.f32 %v875, %v883
    %v885 = vrot.slane %v884, 2
    %v886 = vadd.f32 %v884, %v885
    %v887 = vrot.slane %v886, 1
    %v888 = vadd.f32 %v886, %v887
    %v889 = vrot.slane %v876, 4
    %v890 = vadd.f32 %v876, %v889
    %v891 = vrot.slane %v890, 2
    %v892 = vadd.f32 %v890, %v891
    %v893 = vrot.slane %v892, 1
    %v894 = vadd.f32 %v892, %v893
    %v895 = vrot.slane %v877, 4
    %v896 = vadd.f32 %v877, %v895
    %v897 = vrot.slane %v896, 2
    %v898 = vadd.f32 %v896, %v897
    %v899 = vrot.slane %v898, 1
    %v900 = vadd.f32 %v898, %v899
    %v901 = vrot.slane %v878, 4
    %v902 = vadd.f32 %v878, %v901
    %v903 = vrot.slane %v902, 2
    %v904 = vadd.f32 %v902, %v903
    %v905 = vrot.slane %v904, 1
    %v906 = vadd.f32 %v904, %v905
    %v907 = vrot.slane %v879, 4
    %v908 = vadd.f32 %v879, %v907
    %v909 = vrot.slane %v908, 2
    %v910 = vadd.f32 %v908, %v909
    %v911 = vrot.slane %v910, 1
    %v912 = vadd.f32 %v910, %v911
    %v913 = vrot.slane %v880, 4
    %v914 = vadd.f32 %v880, %v913
    %v915 = vrot.slane %v914, 2
    %v916 = vadd.f32 %v914, %v915
    %v917 = vrot.slane %v916, 1
    %v918 = vadd.f32 %v916, %v917
    %v919 = vrot.slane %v881, 4
    %v920 = vadd.f32 %v881, %v919
    %v921 = vrot.slane %v920, 2
    %v922 = vadd.f32 %v920, %v921
    %v923 = vrot.slane %v922, 1
    %v924 = vadd.f32 %v922, %v923
    %v925 = vrot.slane %v882, 4
    %v926 = vadd.f32 %v882, %v925
    %v927 = vrot.slane %v926, 2
    %v928 = vadd.f32 %v926, %v927
    %v929 = vrot.slane %v928, 1
    %v930 = vadd.f32 %v928, %v929
    %v931 = vmax.f32 %v888, 0.0
    %v932 = vmax.f32 %v894, 0.0
    %v933 = vmax.f32 %v900, 0.0
    %v934 = vmax.f32 %v906, 0.0
    %v935 = vmax.f32 %v912, 0.0
    %v936 = vmax.f32 %v918, 0.0
    %v937 = vmax.f32 %v924, 0.0
    %v938 = vmax.f32 %v930, 0.0
    %v939 = vld [vmem:[%s3 + $0x10] sm:$0xff]
    %941 = vset.pattern.permute.xlu0 0
    %942 = vperm.xlu0 %941, %v939
    %v943 = vpop.permute.xlu0 %942
    %v944 = vrot.slane %v943, 1
    %v945 = vrot.slane %v943, 2
    %v946 = vrot.slane %v943, 3
    %v947 = vrot.slane %v943, 4
    %v948 = vrot.slane %v943, 5
    %v949 = vrot.slane %v943, 6
    %v950 = vrot.slane %v943, 7
    %v959 = vmul.f32 %v931, %v943
    %v960 = vmul.f32 %v932, %v944
    %v961 = vmul.f32 %v933, %v945
    %v962 = vmul.f32 %v934, %v946
    %v963 = vmul.f32 %v935, %v947
    %v964 = vmul.f32 %v936, %v948
    %v965 = vmul.f32 %v937, %v949
    %v966 = vmul.f32 %v938, %v950
    %v975 = vrot.slane %v960, 7
    %v976 = vsel %vm724, %v975, %v959
    %v977 = vrot.slane %v961, 6
    %v978 = vsel %vm727, %v977, %v976
    %v979 = vrot.slane %v962, 5
    %v980 = vsel %vm730, %v979, %v978
    %v981 = vrot.slane %v963, 4
    %v982 = vsel %vm733, %v981, %v980
    %v983 = vrot.slane %v964, 3
    %v984 = vsel %vm736, %v983, %v982
    %v985 = vrot.slane %v965, 2
    %v986 = vsel %vm739, %v985, %v984
    %v987 = vrot.slane %v966, 1
    %v988 = vsel %vm742, %v987, %v986
    %v990 = vrot.slane %v988, 4
    %v991 = vadd.f32 %v988, %v990
    %v992 = vrot.slane %v991, 2
    %v993 = vadd.f32 %v991, %v992
    %v994 = vrot.slane %v993, 1
    %v995 = vadd.f32 %v993, %v994
    %v996 = vadd.f32 %v873, %v995
    %v997 = vld [vmem:[#allocation2 + $0x18] sm:$0xff]
    %v998 = vmul.f32 %v614, %v997
    %v999 = vmul.f32 %v615, %v997
    %v1000 = vmul.f32 %v616, %v997
    %v1001 = vmul.f32 %v617, %v997
    %v1002 = vmul.f32 %v618, %v997
    %v1003 = vmul.f32 %v619, %v997
    %v1004 = vmul.f32 %v620, %v997
    %v1005 = vmul.f32 %v621, %v997
    %v1006 = vrot.slane %v998, 4
    %v1007 = vadd.f32 %v998, %v1006
    %v1008 = vrot.slane %v1007, 2
    %v1009 = vadd.f32 %v1007, %v1008
    %v1010 = vrot.slane %v1009, 1
    %v1011 = vadd.f32 %v1009, %v1010
    %v1012 = vrot.slane %v999, 4
    %v1013 = vadd.f32 %v999, %v1012
    %v1014 = vrot.slane %v1013, 2
    %v1015 = vadd.f32 %v1013, %v1014
    %v1016 = vrot.slane %v1015, 1
    %v1017 = vadd.f32 %v1015, %v1016
    %v1018 = vrot.slane %v1000, 4
    %v1019 = vadd.f32 %v1000, %v1018
    %v1020 = vrot.slane %v1019, 2
    %v1021 = vadd.f32 %v1019, %v1020
    %v1022 = vrot.slane %v1021, 1
    %v1023 = vadd.f32 %v1021, %v1022
    %v1024 = vrot.slane %v1001, 4
    %v1025 = vadd.f32 %v1001, %v1024
    %v1026 = vrot.slane %v1025, 2
    %v1027 = vadd.f32 %v1025, %v1026
    %v1028 = vrot.slane %v1027, 1
    %v1029 = vadd.f32 %v1027, %v1028
    %v1030 = vrot.slane %v1002, 4
    %v1031 = vadd.f32 %v1002, %v1030
    %v1032 = vrot.slane %v1031, 2
    %v1033 = vadd.f32 %v1031, %v1032
    %v1034 = vrot.slane %v1033, 1
    %v1035 = vadd.f32 %v1033, %v1034
    %v1036 = vrot.slane %v1003, 4
    %v1037 = vadd.f32 %v1003, %v1036
    %v1038 = vrot.slane %v1037, 2
    %v1039 = vadd.f32 %v1037, %v1038
    %v1040 = vrot.slane %v1039, 1
    %v1041 = vadd.f32 %v1039, %v1040
    %v1042 = vrot.slane %v1004, 4
    %v1043 = vadd.f32 %v1004, %v1042
    %v1044 = vrot.slane %v1043, 2
    %v1045 = vadd.f32 %v1043, %v1044
    %v1046 = vrot.slane %v1045, 1
    %v1047 = vadd.f32 %v1045, %v1046
    %v1048 = vrot.slane %v1005, 4
    %v1049 = vadd.f32 %v1005, %v1048
    %v1050 = vrot.slane %v1049, 2
    %v1051 = vadd.f32 %v1049, %v1050
    %v1052 = vrot.slane %v1051, 1
    %v1053 = vadd.f32 %v1051, %v1052
    %v1054 = vmax.f32 %v1011, 0.0
    %v1055 = vmax.f32 %v1017, 0.0
    %v1056 = vmax.f32 %v1023, 0.0
    %v1057 = vmax.f32 %v1029, 0.0
    %v1058 = vmax.f32 %v1035, 0.0
    %v1059 = vmax.f32 %v1041, 0.0
    %v1060 = vmax.f32 %v1047, 0.0
    %v1061 = vmax.f32 %v1053, 0.0
    %v1062 = vld [vmem:[%s3 + $0x18] sm:$0xff]
    %1064 = vset.pattern.permute.xlu0 0
    %1065 = vperm.xlu0 %1064, %v1062
    %v1066 = vpop.permute.xlu0 %1065
    %v1067 = vrot.slane %v1066, 1
    %v1068 = vrot.slane %v1066, 2
    %v1069 = vrot.slane %v1066, 3
    %v1070 = vrot.slane %v1066, 4
    %v1071 = vrot.slane %v1066, 5
    %v1072 = vrot.slane %v1066, 6
    %v1073 = vrot.slane %v1066, 7
    %v1082 = vmul.f32 %v1054, %v1066
    %v1083 = vmul.f32 %v1055, %v1067
    %v1084 = vmul.f32 %v1056, %v1068
    %v1085 = vmul.f32 %v1057, %v1069
    %v1086 = vmul.f32 %v1058, %v1070
    %v1087 = vmul.f32 %v1059, %v1071
    %v1088 = vmul.f32 %v1060, %v1072
    %v1089 = vmul.f32 %v1061, %v1073
    %v1098 = vrot.slane %v1083, 7
    %v1099 = vsel %vm724, %v1098, %v1082
    %v1100 = vrot.slane %v1084, 6
    %v1101 = vsel %vm727, %v1100, %v1099
    %v1102 = vrot.slane %v1085, 5
    %v1103 = vsel %vm730, %v1102, %v1101
    %v1104 = vrot.slane %v1086, 4
    %v1105 = vsel %vm733, %v1104, %v1103
    %v1106 = vrot.slane %v1087, 3
    %v1107 = vsel %vm736, %v1106, %v1105
    %v1108 = vrot.slane %v1088, 2
    %v1109 = vsel %vm739, %v1108, %v1107
    %v1110 = vrot.slane %v1089, 1
    %v1111 = vsel %vm742, %v1110, %v1109
    %v1113 = vrot.slane %v1111, 4
    %v1114 = vadd.f32 %v1111, %v1113
    %v1115 = vrot.slane %v1114, 2
    %v1116 = vadd.f32 %v1114, %v1115
    %v1117 = vrot.slane %v1116, 1
    %v1118 = vadd.f32 %v1116, %v1117
    %v1119 = vadd.f32 %v996, %v1118
    %s1120 = sld [smem:[#allocation3]]
    %v1121 = vstv %s1120
    %v1122 = vadd.f32 %v1119, %v1121
    %v1123 = vlaneseq
    %v1124 = vand.u32 %v1123, 127
    %vm1125 = vcmp.ge.s32.totalorder %v1124, 0
    %vm1126 = vcmp.lt.s32.totalorder %v1124, 8
    %vm1127 = vmand %vm1125, %vm1126
    %v1128 = vsel %vm1127, %v1122, 0.0
    %vm1129 = vcmask 1040384
    %v1130 = vsel %vm1129, %v1128, 0.0
    %1131 = vadd.xlane.f32.xlu0 %v1130
    %v1132 = vpop.xlane.xlu0 %1131
    %v1133 = vrot.slane %v1132, 4
    %v1134 = vadd.f32 %v1132, %v1133
    %v1135 = vrot.slane %v1134, 2
    %v1136 = vadd.f32 %v1134, %v1135
    %v1137 = vrot.slane %v1136, 1
    %v1138 = vadd.f32 %v1136, %v1137
    %s1139 = vtos %v1138
    %v1140 = vstv %s1139
    %vm1141 = vcmp.eq.s32.totalorder %v1124, 0
    %v1142 = vmul.f32 %v1140, 0.125
    %v1143 = vsel %vm1141, %v1142, 0.0
    %vm1144 = vcmp.ge.s32.totalorder %v1124, 8
    %vm1145 = vcmp.lt.s32.totalorder %v1124, 16
    %vm1146 = vmand %vm1144, %vm1145
    %v1147 = vsel %vm1146, %v1122, 0.0
    %v1148 = vsel %vm1129, %v1147, 0.0
    %1149 = vadd.xlane.f32.xlu0 %v1148
    %v1150 = vpop.xlane.xlu0 %1149
    %v1151 = vrot.slane %v1150, 4
    %v1152 = vadd.f32 %v1150, %v1151
    %v1153 = vrot.slane %v1152, 2
    %v1154 = vadd.f32 %v1152, %v1153
    %v1155 = vrot.slane %v1154, 1
    %v1156 = vadd.f32 %v1154, %v1155
    %s1157 = vtos %v1156
    %v1158 = vstv %s1157
    %vm1159 = vcmp.eq.s32.totalorder %v1124, 1
    %v1160 = vmul.f32 %v1158, 0.125
    %v1161 = vsel %vm1159, %v1160, 0.0
    %v1162 = vadd.f32 %v1143, %v1161
    %1163 = vst [vmem:[%s5] sm:$0x1] %v1162
    // Predicated region
    $region26: #{embedding_att_forward.1} parent=1 // pred_check
      _
    $region27: #{embedding_att_forward.1} parent=1 // pred_check_branch
      %1165 = sbr.rel (0) target = $region29
    $region28: #{embedding_att_forward.1} parent=1 // pred_region
      _
    $region29: #{embedding_att_forward.1} parent=1 // pred_fallthru
      _
    // Predicated region
    $region30: #{embedding_att_forward.1} parent=1 // pred_check
      _
    $region31: #{embedding_att_forward.1} parent=1 // pred_check_branch
      %1167 = sbr.rel (0) target = $region33
    $region32: #{embedding_att_forward.1} parent=1 // pred_region
      _
    $region33: #{embedding_att_forward.1} parent=1 // pred_fallthru
      _
    %1168 = vsyncpa [#allocation5], 1

</llo_original>
